<compile_context>
chip_gen: v7x
topology: tpu7x:2x2x1
jax: 0.10.0
libtpu: 0.0.40
codegen_flags: <defaults>
</compile_context>

<pallas_src>
import functools
import math

import jax
import jax.numpy as jnp
from jax.experimental import pallas as pl
from jax.experimental.pallas import tpu as pltpu


def _round_up(x, m):
    return (x + m - 1) // m * m


def _vmem_capacity_bytes():
    try:
        info = pltpu.get_tpu_info()
        cap = getattr(info, "vmem_capacity_bytes", None)
        if cap:
            return int(cap)
    except Exception:
        pass
    return 64 * (1 << 20)  # conservative (v7x-sized) fallback


def _activate(h, activation):
    if activation == "relu":
        return jnp.maximum(h, 0.0)
    if activation == "gelu":
        return jax.nn.gelu(h)
    raise ValueError(f"unsupported activation: {activation}")


def _ffn_kernel_accum_out(x_ref, w1_ref, b1_ref, w2_ref, b2_ref, o_ref, *, activation):
    """f32 output: accumulate partial H-tile products directly into the resident
    output block (its block index is constant across the H grid axis)."""
    h_idx = pl.program_id(1)

    @pl.when(h_idx == 0)
    def _init():
        # Second-linear bias applied exactly once, at accumulator init.
        o_ref[...] = jnp.broadcast_to(b2_ref[...], o_ref.shape)

    # First linear (MXU, f32 accumulate) + f32 bias + activation on this H tile.
    h = jnp.dot(x_ref[...], w1_ref[...], preferred_element_type=jnp.float32)
    h = _activate(h + b1_ref[...], activation)
    # Second linear: accumulate partial products over H tiles directly into the output.
    o_ref[...] += jnp.dot(h.astype(w2_ref.dtype), w2_ref[...],
                          preferred_element_type=jnp.float32)
    # Dropout p=0.0 -> identity.


def _ffn_kernel_scratch(x_ref, w1_ref, b1_ref, w2_ref, b2_ref, o_ref, acc_ref, *, activation):
    """Narrow (e.g. bf16) output: accumulate in an f32 VMEM scratch, cast once at the end."""
    h_idx = pl.program_id(1)

    @pl.when(h_idx == 0)
    def _init():
        acc_ref[...] = jnp.broadcast_to(b2_ref[...], acc_ref.shape)

    h = jnp.dot(x_ref[...], w1_ref[...], preferred_element_type=jnp.float32)
    h = _activate(h + b1_ref[...], activation)
    acc_ref[...] += jnp.dot(h.astype(w2_ref.dtype), w2_ref[...],
                            preferred_element_type=jnp.float32)

    @pl.when(h_idx == pl.num_programs(1) - 1)
    def _finalize():
        # Dropout p=0.0 -> identity.
        o_ref[...] = acc_ref[...].astype(o_ref.dtype)


def make_feed_forward(w1, b1, w2, b2, *, compute_dtype=jnp.bfloat16,
                      activation="relu", block_m=None, block_h=None):
    """Build a jitted feed-forward closure. Weight padding / casting happens ONCE here.

    w1: (D, H), b1: (1, H) or (H,), w2: (H, D), b2: (1, D) or (D,).
    Returned fn maps x: (..., D) -> (..., D) in x.dtype.
    """
    D, H = w1.shape
    cdtype = jnp.dtype(compute_dtype)
    cd_isz = cdtype.itemsize

    # Generation-aware VMEM budgets.
    cap = _vmem_capacity_bytes()
    if cap >= 100 * (1 << 20):            # v5e / v6e: 128 MiB physical VMEM
        resident_budget = 56 * (1 << 20)
        streamed_budget = 40 * (1 << 20)
        vmem_cap_limit = 104 * (1 << 20)
    else:                                  # v7x: 64 MiB physical VMEM -> leave headroom
        resident_budget = 24 * (1 << 20)
        streamed_budget = 16 * (1 << 20)
        vmem_cap_limit = 56 * (1 << 20)

    # Lane-dense padding: last dims to multiples of 128; streamed H tile 256-aligned
    # for the 256-wide v6e/v7x MXU.  Zero padding is mathematically exact here.
    Dp = _round_up(D, 128)
    Hp = _round_up(H, 128)

    if block_h is None:
        full_w_bytes = 2 * Dp * Hp * cd_isz            # w1 + w2, single-buffered
        if full_w_bytes <= resident_budget:
            th = Hp                                     # keep full weights resident
        else:
            # Stream H tiles: two weights x double-buffered (Dp, th) tiles.
            th = (streamed_budget // (4 * Dp * cd_isz)) // 256 * 256
            th = max(128, min(Hp, th))
            # TODO(synk): for very large D (>~16K f32 / ~32K bf16) even th=128 can exceed
            # the v7x budget; that regime needs a third grid axis tiling the D contraction.
    else:
        th = max(128, min(Hp, _round_up(block_h, 128)))
    Hp = _round_up(Hp, th)
    n_h = Hp // th
    resident = (n_h == 1)

    # One-time weight padding / casting (hoisted out of the per-call path).
    f32 = jnp.float32
    w1p = jnp.pad(jnp.asarray(w1, cdtype), ((0, Dp - D), (0, Hp - H)))
    b1p = jnp.pad(jnp.asarray(b1, f32).reshape(1, H), ((0, 0), (0, Hp - H)))
    w2p = jnp.pad(jnp.asarray(w2, cdtype), ((0, Hp - H), (0, Dp - D)))
    b2p = jnp.pad(jnp.asarray(b2, f32).reshape(1, D), ((0, 0), (0, Dp - D)))

    def w_spec(shape, idx):
        # Resident (constant-index) operands: single buffer, no pointless double-buffering.
        if resident:
            return pl.BlockSpec(shape, idx, pipeline_mode=pl.Buffered(1))
        return pl.BlockSpec(shape, idx)

    @jax.jit
    def feed_forward(x):
        assert x.shape[-1] == D, f"expected last dim {D}, got {x.shape}"
        lead = x.shape[:-1]
        M = math.prod(lead) if lead else 1
        out_dtype = x.dtype
        out_isz = jnp.dtype(out_dtype).itemsize
        use_scratch = jnp.dtype(out_dtype) != jnp.float32

        # M tile: big tiles amortize per-grid-step overhead and weight re-reads.
        sub = 8 if cd_isz >= 4 else 16
        if M <= 128:
            bm = _round_up(M, sub)            # no wasted MXU rows for tiny B*T
        else:
            bm_def = block_m if block_m is not None else (512 if n_h > 1 else 256)
            bm = _round_up(min(bm_def, _round_up(M, 256)), 256)
            # Give both v7x TensorCores work when M is big enough for two tiles.
            if M > 256 and _round_up(M, bm) // bm < 2:
                bm = max(256, _round_up((M + 1) // 2, 256))
        Mp = _round_up(M, bm)
        n_m = Mp // bm

        # Pad / cast the activations only (weights were prepared at factory time).
        x2 = jnp.pad(x.reshape(M, D).astype(cdtype), ((0, Mp - M), (0, Dp - D)))

        # Explicit VMEM budget so large configs neither OOM nor silently fall back.
        w_bufs = 1 if resident else 2
        vmem_est = (
            2 * bm * Dp * cd_isz                          # x tiles (double-buffered)
            + 2 * bm * Dp * out_isz                       # out tiles (double-buffered)
            + w_bufs * (2 * Dp * th * cd_isz + th * 4)    # w1 + w2 + b1 tiles
            + Dp * 4                                      # b2 (resident)
            + bm * th * 4                                 # hidden intermediate (f32)
            + (bm * Dp * 4 if use_scratch else 0)         # f32 accumulator scratch
        )
        vmem_limit = int(min(max(int(1.5 * vmem_est), 32 * (1 << 20)), vmem_cap_limit))

        # Streamed weights are re-read once per M tile.
        weight_passes = n_m if n_h > 1 else 1
        cost = pl.CostEstimate(
            flops=int(4 * Mp * Dp * Hp),                  # two matmuls: 2*M*D*H each
            transcendentals=0,
            bytes_accessed=int(
                Mp * Dp * cd_isz
                + weight_passes * (w1p.size + w2p.size) * cd_isz
                + (b1p.size + b2p.size) * 4
                + Mp * Dp * out_isz),
        )

        in_specs = [
            pl.BlockSpec((bm, Dp), lambda i, h: (i, 0)),      # x (constant across h)
            w_spec((Dp, th), lambda i, h: (0, h)),            # w1 H-tile
            w_spec((1, th), lambda i, h: (0, h)),             # b1 H-tile
            w_spec((th, Dp), lambda i, h: (h, 0)),            # w2 H-tile
            pl.BlockSpec((1, Dp), lambda i, h: (0, 0),
                         pipeline_mode=pl.Buffered(1)),       # b2 (always resident)
        ]
        out_spec = pl.BlockSpec((bm, Dp), lambda i, h: (i, 0))

        if use_scratch:
            kernel = functools.partial(_ffn_kernel_scratch, activation=activation)
            scratch = [pltpu.VMEM((bm, Dp), jnp.float32)]
        else:
            kernel = functools.partial(_ffn_kernel_accum_out, activation=activation)
            scratch = []

        out = pl.pallas_call(
            kernel,
            out_shape=jax.ShapeDtypeStruct((Mp, Dp), out_dtype),
            grid_spec=pltpu.PrefetchScalarGridSpec(
                num_scalar_prefetch=0,
                grid=(n_m, n_h),
                in_specs=in_specs,
                out_specs=out_spec,
                scratch_shapes=scratch,
            ),
            compiler_params=pltpu.CompilerParams(
                dimension_semantics=("parallel", "arbitrary"),
                vmem_limit_bytes=vmem_limit,
            ),
            cost_estimate=cost,
        )(x2, w1p, b1p, w2p, b2p)

        return out[:M, :D].reshape(*lead, D)

    return feed_forward


def feed_forward(x, w1, b1, w2, b2, **kwargs):
    """One-shot convenience wrapper (prefer make_feed_forward to reuse padded weights)."""
    return make_feed_forward(w1, b1, w2, b2, **kwargs)(x)


def init_params(key, n_embed, wide_factor=4, dtype=jnp.float32):
    """Deterministic init mimicking nn.Linear's uniform(-1/sqrt(fan_in), 1/sqrt(fan_in))."""
    hidden = wide_factor * n_embed
    k1, k2, k3, k4 = jax.random.split(key, 4)
    bound1 = 1.0 / (n_embed ** 0.5)
    bound2 = 1.0 / (hidden ** 0.5)
    w1 = jax.random.uniform(k1, (n_embed, hidden), dtype, -bound1, bound1)
    b1 = jax.random.uniform(k2, (1, hidden), dtype, -bound1, bound1)
    w2 = jax.random.uniform(k3, (hidden, n_embed), dtype, -bound2, bound2)
    b2 = jax.random.uniform(k4, (1, n_embed), dtype, -bound2, bound2)
    return w1, b1, w2, b2


if __name__ == "__main__":
    # Small shapes consistent with the module: batch=2, seq=8, n_embed=32, hidden=128.
    B, T, n_embed, wide_factor = 2, 8, 32, 4

    key = jax.random.PRNGKey(0)
    kx, kp = jax.random.split(key)
    x = jax.random.normal(kx, (B, T, n_embed), dtype=jnp.float32)
    w1, b1, w2, b2 = init_params(kp, n_embed, wide_factor)

    ref = jnp.maximum(x.reshape(-1, n_embed) @ w1 + b1, 0.0) @ w2 + b2
    ref = ref.reshape(B, T, n_embed)

    # Default path: bf16 MXU operands, f32 accumulation, f32 output (accumulates in o_ref).
    ffn_default = make_feed_forward(w1, b1, w2, b2)
    out = jax.block_until_ready(ffn_default(x))
    assert out.shape == (B, T, n_embed) and out.dtype == x.dtype
    assert jnp.allclose(out, ref, atol=5e-2, rtol=5e-2)

    # Strict f32 MXU path.
    ffn_f32 = make_feed_forward(w1, b1, w2, b2, compute_dtype=jnp.float32)
    out_f32 = jax.block_until_ready(ffn_f32(x))
    assert jnp.allclose(out_f32, ref, atol=1e-5, rtol=1e-5)

    # bf16 activations in / out: exercises the f32 scratch-accumulator kernel.
    out_bf16 = jax.block_until_ready(ffn_default(x.astype(jnp.bfloat16)))
    assert out_bf16.dtype == jnp.bfloat16
    assert jnp.allclose(out_bf16.astype(jnp.float32), ref, atol=1e-1, rtol=1e-1)

    print("KERNEL_OK")
</pallas_src>

<mosaic_0001>
module attributes {stable_mosaic.version = 11 : i64} {
  func.func @_ffn_kernel_accum_out(%arg0: i32, %arg1: i32, %arg2: memref<16x128xbf16, #tpu.memory_space<vmem>>, %arg3: memref<128x128xbf16, #tpu.memory_space<vmem>>, %arg4: memref<1x128xf32, #tpu.memory_space<vmem>>, %arg5: memref<128x128xbf16, #tpu.memory_space<vmem>>, %arg6: memref<1x128xf32, #tpu.memory_space<vmem>>, %arg7: memref<16x128xf32, #tpu.memory_space<vmem>>) attributes {dimension_semantics = [#tpu.dimension_semantics<parallel>, #tpu.dimension_semantics<arbitrary>], iteration_bounds = array<i64: 1, 1>, scalar_prefetch = 0 : i64, scratch_operands = 0 : i64, tpu.core_type = #tpu.core_type<tc>, window_params = [{transform_indices = @transform_0, window_bounds = array<i64: 16, 128>}, {pipeline_mode = #tpu.pipeline_mode<synchronous>, transform_indices = @transform_1, window_bounds = array<i64: 128, 128>}, {pipeline_mode = #tpu.pipeline_mode<synchronous>, transform_indices = @transform_2, window_bounds = array<i64: 1, 128>}, {pipeline_mode = #tpu.pipeline_mode<synchronous>, transform_indices = @transform_3, window_bounds = array<i64: 128, 128>}, {pipeline_mode = #tpu.pipeline_mode<synchronous>, transform_indices = @transform_4, window_bounds = array<i64: 1, 128>}, {transform_indices = @transform_5, window_bounds = array<i64: 16, 128>}]} {
    %c0_i32 = arith.constant 0 : i32
    %0 = arith.cmpi eq, %arg1, %c0_i32 : i32
    %1 = arith.extui %0 : i1 to i32
    %c0_i32_0 = arith.constant 0 : i32
    %2 = arith.cmpi ne, %1, %c0_i32_0 : i32
    scf.if %2 {
      %c0_14 = arith.constant 0 : index
      %c0_15 = arith.constant 0 : index
      %17 = vector.load %arg6[%c0_14, %c0_15] : memref<1x128xf32, #tpu.memory_space<vmem>>, vector<1x128xf32>
      %18 = vector.shape_cast %17 : vector<1x128xf32> to vector<1x128xf32>
      %19 = vector.broadcast %18 : vector<1x128xf32> to vector<16x128xf32>
      %c0_16 = arith.constant 0 : index
      %c0_17 = arith.constant 0 : index
      %20 = vector.load %arg7[%c0_16, %c0_17] : memref<16x128xf32, #tpu.memory_space<vmem>>, vector<16x128xf32>
      tpu.vector_store %arg7[%c0_16, %c0_17], %19 {strides = array<i32>} : memref<16x128xf32, #tpu.memory_space<vmem>>, vector<16x128xf32>,
    } else {
    }
    %c0 = arith.constant 0 : index
    %c0_1 = arith.constant 0 : index
    %3 = vector.load %arg2[%c0, %c0_1] : memref<16x128xbf16, #tpu.memory_space<vmem>>, vector<16x128xbf16>
    %c0_2 = arith.constant 0 : index
    %c0_3 = arith.constant 0 : index
    %4 = vector.load %arg3[%c0_2, %c0_3] : memref<128x128xbf16, #tpu.memory_space<vmem>>, vector<128x128xbf16>
    %cst = arith.constant dense<0.000000e+00> : vector<16x128xf32>
    %5 = tpu.matmul %3, %4, %cst {dimension_numbers = #tpu.dot_dimension_numbers<[1], [0], [0], [1], [0, 0, 1, 1], [], []>} : vector<16x128xbf16>, vector<128x128xbf16>, vector<16x128xf32> -> vector<16x128xf32>
    %c0_4 = arith.constant 0 : index
    %c0_5 = arith.constant 0 : index
    %6 = vector.load %arg4[%c0_4, %c0_5] : memref<1x128xf32, #tpu.memory_space<vmem>>, vector<1x128xf32>
    %7 = vector.broadcast %6 : vector<1x128xf32> to vector<16x128xf32>
    %8 = arith.addf %5, %7 : vector<16x128xf32>
    %cst_6 = arith.constant 0.000000e+00 : f32
    %9 = vector.broadcast %cst_6 : f32 to vector<16x128xf32>
    %10 = arith.maximumf %8, %9 : vector<16x128xf32>
    %c0_7 = arith.constant 0 : index
    %c0_8 = arith.constant 0 : index
    %11 = vector.load %arg7[%c0_7, %c0_8] : memref<16x128xf32, #tpu.memory_space<vmem>>, vector<16x128xf32>
    %12 = arith.truncf %10 : vector<16x128xf32> to vector<16x128xbf16>
    %c0_9 = arith.constant 0 : index
    %c0_10 = arith.constant 0 : index
    %13 = vector.load %arg5[%c0_9, %c0_10] : memref<128x128xbf16, #tpu.memory_space<vmem>>, vector<128x128xbf16>
    %cst_11 = arith.constant dense<0.000000e+00> : vector<16x128xf32>
    %14 = tpu.matmul %12, %13, %cst_11 {dimension_numbers = #tpu.dot_dimension_numbers<[1], [0], [0], [1], [0, 0, 1, 1], [], []>} : vector<16x128xbf16>, vector<128x128xbf16>, vector<16x128xf32> -> vector<16x128xf32>
    %15 = arith.addf %11, %14 : vector<16x128xf32>
    %c0_12 = arith.constant 0 : index
    %c0_13 = arith.constant 0 : index
    %16 = vector.load %arg7[%c0_12, %c0_13] : memref<16x128xf32, #tpu.memory_space<vmem>>, vector<16x128xf32>
    tpu.vector_store %arg7[%c0_12, %c0_13], %15 {strides = array<i32>} : memref<16x128xf32, #tpu.memory_space<vmem>>, vector<16x128xf32>,
    return
  }
  func.func @transform_0(%arg0: i32, %arg1: i32) -> (i32, i32) {
    %c0_i32 = arith.constant 0 : i32
    %c0_i32_0 = arith.constant 0 : i32
    return %arg0, %c0_i32 : i32, i32
  }
  func.func @transform_1(%arg0: i32, %arg1: i32) -> (i32, i32) {
    %c0_i32 = arith.constant 0 : i32
    %c0_i32_0 = arith.constant 0 : i32
    return %c0_i32, %arg1 : i32, i32
  }
  func.func @transform_2(%arg0: i32, %arg1: i32) -> (i32, i32) {
    %c0_i32 = arith.constant 0 : i32
    %c0_i32_0 = arith.constant 0 : i32
    return %c0_i32, %arg1 : i32, i32
  }
  func.func @transform_3(%arg0: i32, %arg1: i32) -> (i32, i32) {
    %c0_i32 = arith.constant 0 : i32
    %c0_i32_0 = arith.constant 0 : i32
    return %arg1, %c0_i32 : i32, i32
  }
  func.func @transform_4(%arg0: i32, %arg1: i32) -> (i32, i32) {
    %c0_i32 = arith.constant 0 : i32
    %c0_i32_0 = arith.constant 0 : i32
    %c0_i32_1 = arith.constant 0 : i32
    return %c0_i32, %c0_i32_0 : i32, i32
  }
  func.func @transform_5(%arg0: i32, %arg1: i32) -> (i32, i32) {
    %c0_i32 = arith.constant 0 : i32
    %c0_i32_0 = arith.constant 0 : i32
    return %arg0, %c0_i32 : i32, i32
  }
}

</mosaic_0001>

<llo_original>
// kernel: feed_forward.1
$region0: #{feed_forward.1}
  #allocation0 [shape = 'u32[]', space=smem, size = 0x4, offset = 0x4, fixed_abs, tag = 'smem constant byte address 0x4 - core index']
  #allocation1 [shape = 'u32[144,128]{1,0:T(1,128)}', space=vmem, size = 0x12000, scoped, tag = 'internal scratch']
  %s0 = inlined_call_operand.vmem [shape: bf16[16,128], index: 0, kind: input, shape index: {}]
  %s1 = inlined_call_operand.hbm [shape: bf16[128,128], index: 1, kind: input, shape index: {}]
  %s2 = inlined_call_operand.vmem [shape: f32[1,128], index: 2, kind: input, shape index: {}]
  %s3 = inlined_call_operand.vmem [shape: bf16[128,128], index: 3, kind: input, shape index: {}]
  %s4 = inlined_call_operand.vmem [shape: f32[1,128], index: 4, kind: input, shape index: {}]
  %s5 = inlined_call_operand.vmem [shape: f32[16,128], index: 5, kind: output, shape index: {}]
  %s6 = sld [smem:[#allocation0]]
  $region38: #{feed_forward.1} parent=0
    _
  %s8 = ssub.s32 1, %s6
  %s9 = scalar_select 0, %s8, %s6
  $region1: #{feed_forward.1} parent=0
    #allocation2 [shape = 'u8[32768]{0}', space=vmem, size = 0x8000, scoped, tag = 'input window, operand 1, single buffered']
    #allocation3 [shape = 's32[1]{0}', space=sflag, size = 0x4, scoped, tag = 'scoped memory for feed_forward.1']
    %10 = vsyncpa [#allocation3], 0
    // Predicated region
    $region2: #{feed_forward.1} parent=1 // pred_check
      _
    $region3: #{feed_forward.1} parent=1 // pred_check_branch
      %12 = sbr.rel (0) target = $region5
    $region4: #{feed_forward.1} parent=1 // pred_region
      _
    $region5: #{feed_forward.1} parent=1 // pred_fallthru
      _
    // Predicated region
    $region6: #{feed_forward.1} parent=1 // pred_check
      _
    $region7: #{feed_forward.1} parent=1 // pred_check_branch
      %14 = sbr.rel (0) target = $region9
    $region8: #{feed_forward.1} parent=1 // pred_region
      %s16 = ssub.s32 1024, 1024
      %17 = vsyncadd [#allocation3], %s16
      %s18 = sshll.u32 [#allocation2], 4
      %s19 = int_to_ptr.vmem [resolvable:$true] %s18
      %24 = dma.hbm_to_vmem [thread:$0]  %s1, 1024, %s19, [#allocation3], 64, 64, 4
    $region9: #{feed_forward.1} parent=1 // pred_fallthru
      _
    // Predicated region
    $region10: #{feed_forward.1} parent=1 // pred_check
      _
    $region11: #{feed_forward.1} parent=1 // pred_check_branch
      %26 = sbr.rel (0) target = $region13
    $region12: #{feed_forward.1} parent=1 // pred_region
      _
    $region13: #{feed_forward.1} parent=1 // pred_fallthru
      _
    // Predicated region
    $region14: #{feed_forward.1} parent=1 // pred_check
      _
    $region15: #{feed_forward.1} parent=1 // pred_check_branch
      %28 = sbr.rel (0) target = $region17
    $region16: #{feed_forward.1} parent=1 // pred_region
      _
    $region17: #{feed_forward.1} parent=1 // pred_fallthru
      _
    // Predicated region
    $region18: #{feed_forward.1} parent=1 // pred_check
      _
    $region19: #{feed_forward.1} parent=1 // pred_check_branch
      %30 = sbr.rel (0) target = $region21
    $region20: #{feed_forward.1} parent=1 // pred_region
      _
    $region21: #{feed_forward.1} parent=1 // pred_fallthru
      _
    // Predicated region
    $region22: #{feed_forward.1} parent=1 // pred_check
      _
    $region23: #{feed_forward.1} parent=1 // pred_check_branch
      %32 = sbr.rel (0) target = $region25
    $region24: #{feed_forward.1} parent=1 // pred_region
      %33 = dma.done [#allocation3], 1024
    $region25: #{feed_forward.1} parent=1 // pred_fallthru
      _
    %p35 = scmp.eq.s32.totalorder 0, 0
    // Predicated region
    $region26: #{feed_forward.1} parent=1 // pred_check
      %p36 = pneg %p35
    $region27: #{feed_forward.1} parent=1 // pred_check_branch
      %38 = sbr.rel (%p36) target = $region29
    $region28: #{feed_forward.1} parent=1 // pred_region
      %v39 = vld [vmem:[%s4] sm:$0x1]
      %v41 = vlaneseq
      %v42 = vshrl.u32 %v41, 7
      %v43 = vsub.s32 0, %v42
      %v44 = vrot.slane %v39, %v43
      %46 = vst [vmem:[%s5] sm:$0xff] %v44
      %47 = vst [vmem:[%s5 + $0x8] sm:$0xff] %v44
    $region29: #{feed_forward.1} parent=1 // pred_fallthru
      _
    %v48 = vld [vmem:[%s0] sm:$0xf]
    %v49 = vld [vmem:[%s0 + $0x4] sm:$0xf]
    %v50 = vld [vmem:[#allocation2] sm:$0xf]
    %v51 = vld [vmem:[#allocation2 + $0x4] sm:$0xf]
    %v52 = vld [vmem:[#allocation2 + $0x8] sm:$0xf]
    %v53 = vld [vmem:[#allocation2 + $0xc] sm:$0xf]
    %v54 = vld [vmem:[#allocation2 + $0x10] sm:$0xf]
    %v55 = vld [vmem:[#allocation2 + $0x14] sm:$0xf]
    %v56 = vld [vmem:[#allocation2 + $0x18] sm:$0xf]
    %v57 = vld [vmem:[#allocation2 + $0x1c] sm:$0xf]
    %v58 = vld [vmem:[#allocation2 + $0x20] sm:$0xf]
    %v59 = vld [vmem:[#allocation2 + $0x24] sm:$0xf]
    %v60 = vld [vmem:[#allocation2 + $0x28] sm:$0xf]
    %v61 = vld [vmem:[#allocation2 + $0x2c] sm:$0xf]
    %v62 = vld [vmem:[#allocation2 + $0x30] sm:$0xf]
    %v63 = vld [vmem:[#allocation2 + $0x34] sm:$0xf]
    %v64 = vld [vmem:[#allocation2 + $0x38] sm:$0xf]
    %v65 = vld [vmem:[#allocation2 + $0x3c] sm:$0xf]
    %v66 = vld [vmem:[%s2] sm:$0x1]
    %v68 = vlaneseq
    %v69 = vshrl.u32 %v68, 7
    %v70 = vsub.s32 0, %v69
    %v71 = vrot.slane %v66, %v70
    %v75 = vunpack.c.l.b16 %v48
    %v76 = vunpack.c.l.b16 %v49
    %v77 = vpack.c.b16 %v76, %v75
    %v95 = vunpack.c.l.b16 %v50
    %v96 = vunpack.c.l.b16 %v51
    %v97 = vunpack.c.l.b16 %v52
    %v98 = vunpack.c.l.b16 %v53
    %v99 = vunpack.c.l.b16 %v54
    %v100 = vunpack.c.l.b16 %v55
    %v101 = vunpack.c.l.b16 %v56
    %v102 = vunpack.c.l.b16 %v57
    %v103 = vunpack.c.l.b16 %v58
    %v104 = vunpack.c.l.b16 %v59
    %v105 = vunpack.c.l.b16 %v60
    %v106 = vunpack.c.l.b16 %v61
    %v107 = vunpack.c.l.b16 %v62
    %v108 = vunpack.c.l.b16 %v63
    %v109 = vunpack.c.l.b16 %v64
    %v110 = vunpack.c.l.b16 %v65
    %v111 = vpack.c.b16 %v96, %v95
    %v112 = vpack.c.b16 %v98, %v97
    %v113 = vpack.c.b16 %v100, %v99
    %v114 = vpack.c.b16 %v102, %v101
    %v115 = vpack.c.b16 %v104, %v103
    %v116 = vpack.c.b16 %v106, %v105
    %v117 = vpack.c.b16 %v108, %v107
    %v118 = vpack.c.b16 %v110, %v109
    %127 = vmatprep.subr.bf16.mxu0 0
    %128 = vmatpush1.bf16.msra.mxu0 %v111
    %129 = vmatprep.subr.bf16.mxu0 0
    %130 = vmatpush1.bf16.msra.mxu0 %v112
    %131 = vmatprep.subr.bf16.mxu0 0
    %132 = vmatpush1.bf16.msra.mxu0 %v113
    %133 = vmatprep.subr.bf16.mxu0 0
    %134 = vmatpush1.bf16.msra.mxu0 %v114
    %135 = vmatprep.subr.bf16.mxu0 0
    %136 = vmatpush1.bf16.msra.mxu0 %v115
    %137 = vmatprep.subr.bf16.mxu0 0
    %138 = vmatpush1.bf16.msra.mxu0 %v116
    %139 = vmatprep.subr.bf16.mxu0 0
    %140 = vmatpush1.bf16.msra.mxu0 %v117
    %141 = vmatprep.subr.bf16.mxu0 0
    %142 = vmatpush1.bf16.msra.mxu0 %v118
    %143 = vmatprep.subr.bf16.mxu0 0
    %144 = vmatpush1.bf16.msra.mxu0 0
    %145 = vmatprep.subr.bf16.mxu0 0
    %146 = vmatpush1.bf16.msra.mxu0 0
    %147 = vmatprep.subr.bf16.mxu0 0
    %148 = vmatpush1.bf16.msra.mxu0 0
    %149 = vmatprep.subr.bf16.mxu0 0
    %150 = vmatpush1.bf16.msra.mxu0 0
    %151 = vmatprep.subr.bf16.mxu0 0
    %152 = vmatpush1.bf16.msra.mxu0 0
    %153 = vmatprep.subr.bf16.mxu0 0
    %154 = vmatpush1.bf16.msra.mxu0 0
    %155 = vmatprep.subr.bf16.mxu0 0
    %156 = vmatpush1.bf16.msra.mxu0 0
    %157 = vmatprep.subr.bf16.mxu0 0
    %158 = vmatpush1.bf16.msra.mxu0 0
    %159 = vmatprep.mubr.bf16.mxu0 0
    %160 = vmatmul.mubr.bf16.gmra.mrb[0].mxu0 %v77
    %v161 = vpop.f32.mrb[0].mxu0
    %v162 = vadd.f32 %v71, %v161
    %v163 = vpop.f32.mrb[0].mxu0
    %v164 = vpop.f32.mrb[0].mxu0
    %v165 = vadd.f32 %v71, %v164
    %v166 = vpop.f32.mrb[0].mxu0
    %167 = vdwg.mxu0
    %v168 = vmax.f32 %v162, 0.0
    %v169 = vmax.f32 %v165, 0.0
    %v170 = vld [vmem:[%s5] sm:$0xff]
    %v171 = vld [vmem:[%s5 + $0x8] sm:$0xff]
    %v172 = vpack.c.bf16 %v169, %v168
    %v173 = vld [vmem:[%s3] sm:$0xf]
    %v174 = vld [vmem:[%s3 + $0x4] sm:$0xf]
    %v175 = vld [vmem:[%s3 + $0x8] sm:$0xf]
    %v176 = vld [vmem:[%s3 + $0xc] sm:$0xf]
    %v177 = vld [vmem:[%s3 + $0x10] sm:$0xf]
    %v178 = vld [vmem:[%s3 + $0x14] sm:$0xf]
    %v179 = vld [vmem:[%s3 + $0x18] sm:$0xf]
    %v180 = vld [vmem:[%s3 + $0x1c] sm:$0xf]
    %v181 = vld [vmem:[%s3 + $0x20] sm:$0xf]
    %v182 = vld [vmem:[%s3 + $0x24] sm:$0xf]
    %v183 = vld [vmem:[%s3 + $0x28] sm:$0xf]
    %v184 = vld [vmem:[%s3 + $0x2c] sm:$0xf]
    %v185 = vld [vmem:[%s3 + $0x30] sm:$0xf]
    %v186 = vld [vmem:[%s3 + $0x34] sm:$0xf]
    %v187 = vld [vmem:[%s3 + $0x38] sm:$0xf]
    %v188 = vld [vmem:[%s3 + $0x3c] sm:$0xf]
    %v205 = vunpack.c.l.b16 %v173
    %v206 = vunpack.c.l.b16 %v174
    %v207 = vunpack.c.l.b16 %v175
    %v208 = vunpack.c.l.b16 %v176
    %v209 = vunpack.c.l.b16 %v177
    %v210 = vunpack.c.l.b16 %v178
    %v211 = vunpack.c.l.b16 %v179
    %v212 = vunpack.c.l.b16 %v180
    %v213 = vunpack.c.l.b16 %v181
    %v214 = vunpack.c.l.b16 %v182
    %v215 = vunpack.c.l.b16 %v183
    %v216 = vunpack.c.l.b16 %v184
    %v217 = vunpack.c.l.b16 %v185
    %v218 = vunpack.c.l.b16 %v186
    %v219 = vunpack.c.l.b16 %v187
    %v220 = vunpack.c.l.b16 %v188
    %v221 = vpack.c.b16 %v206, %v205
    %v222 = vpack.c.b16 %v208, %v207
    %v223 = vpack.c.b16 %v210, %v209
    %v224 = vpack.c.b16 %v212, %v211
    %v225 = vpack.c.b16 %v214, %v213
    %v226 = vpack.c.b16 %v216, %v215
    %v227 = vpack.c.b16 %v218, %v217
    %v228 = vpack.c.b16 %v220, %v219
    %237 = vmatprep.subr.bf16.mxu0 0
    %238 = vmatpush1.bf16.msra.mxu0 %v221
    %239 = vmatprep.subr.bf16.mxu0 0
    %240 = vmatpush1.bf16.msra.mxu0 %v222
    %241 = vmatprep.subr.bf16.mxu0 0
    %242 = vmatpush1.bf16.msra.mxu0 %v223
    %243 = vmatprep.subr.bf16.mxu0 0
    %244 = vmatpush1.bf16.msra.mxu0 %v224
    %245 = vmatprep.subr.bf16.mxu0 0
    %246 = vmatpush1.bf16.msra.mxu0 %v225
    %247 = vmatprep.subr.bf16.mxu0 0
    %248 = vmatpush1.bf16.msra.mxu0 %v226
    %249 = vmatprep.subr.bf16.mxu0 0
    %250 = vmatpush1.bf16.msra.mxu0 %v227
    %251 = vmatprep.subr.bf16.mxu0 0
    %252 = vmatpush1.bf16.msra.mxu0 %v228
    %253 = vmatprep.subr.bf16.mxu0 0
    %254 = vmatpush1.bf16.msra.mxu0 0
    %255 = vmatprep.subr.bf16.mxu0 0
    %256 = vmatpush1.bf16.msra.mxu0 0
    %257 = vmatprep.subr.bf16.mxu0 0
    %258 = vmatpush1.bf16.msra.mxu0 0
    %259 = vmatprep.subr.bf16.mxu0 0
    %260 = vmatpush1.bf16.msra.mxu0 0
    %261 = vmatprep.subr.bf16.mxu0 0
    %262 = vmatpush1.bf16.msra.mxu0 0
    %263 = vmatprep.subr.bf16.mxu0 0
    %264 = vmatpush1.bf16.msra.mxu0 0
    %265 = vmatprep.subr.bf16.mxu0 0
    %266 = vmatpush1.bf16.msra.mxu0 0
    %267 = vmatprep.subr.bf16.mxu0 0
    %268 = vmatpush1.bf16.msra.mxu0 0
    %269 = vmatprep.mubr.bf16.mxu0 0
    %270 = vmatmul.mubr.bf16.gmra.mrb[0].mxu0 %v172
    %v271 = vpop.f32.mrb[0].mxu0
    %v272 = vadd.f32 0.0, %v271
    %v273 = vpop.f32.mrb[0].mxu0
    %v274 = vpop.f32.mrb[0].mxu0
    %v275 = vadd.f32 0.0, %v274
    %v276 = vpop.f32.mrb[0].mxu0
    %277 = vdwg.mxu0
    %v278 = vadd.f32 %v170, %v272
    %v279 = vadd.f32 %v171, %v275
    %280 = vst [vmem:[%s5] sm:$0xff] %v278
    %281 = vst [vmem:[%s5 + $0x8] sm:$0xff] %v279
    // Predicated region
    $region30: #{feed_forward.1} parent=1 // pred_check
      _
    $region31: #{feed_forward.1} parent=1 // pred_check_branch
      %283 = sbr.rel (0) target = $region33
    $region32: #{feed_forward.1} parent=1 // pred_region
      _
    $region33: #{feed_forward.1} parent=1 // pred_fallthru
      _
    // Predicated region
    $region34: #{feed_forward.1} parent=1 // pred_check
      _
    $region35: #{feed_forward.1} parent=1 // pred_check_branch
      %285 = sbr.rel (0) target = $region37
    $region36: #{feed_forward.1} parent=1 // pred_region
      _
    $region37: #{feed_forward.1} parent=1 // pred_fallthru
      _
    %286 = vsyncpa [#allocation3], 1

</llo_original>
